<compile_context>
chip_gen: v5e
topology: v5e:2x2
jax: 0.10.0
libtpu: 0.0.40
codegen_flags: <defaults>
</compile_context>

<pallas_src>
import functools

import jax
import jax.numpy as jnp
import numpy as np
from jax.experimental import pallas as pl
from jax.experimental.pallas import tpu as pltpu


def _round_up(x, m):
    return -(-x // m) * m


def _fused_fconv_kernel(x_ref, masks_ref, w1_ref, w2_ref, gamma_ref, out_ref,
                        *, H, W, K, batch_tile):
    """y = LeakyReLU_0.1(W2 @ im2col(W1 @ im2col(x))) * gamma for batch_tile images.

    Activations live as (C, batch_tile*H*W) with the flattened (image, pixel)
    axis on the 128-lane axis.  Each KxK conv is ONE MXU matmul against an
    im2col matrix built in-register with pltpu.roll lane shifts plus 0/1
    boundary masks (the masks implement the zero padding and also kill any
    cross-image contamination from the rolls).  Biases ride along as an extra
    ones row / weight column, so no separate bias adds are needed.
    """
    HW = H * W
    total = batch_tile * HW
    pad = K // 2
    center = pad * K + pad                      # centre tap: mask is all ones
    masks = masks_ref[...]                      # (K*K, total) 0/1 tap-validity masks
    ones_row = masks[center:center + 1, :]      # all-ones; reused as the bias row

    def im2col_aug(a):
        # a: (C, total) -> (K*K*C + 1, total); row order (dy, dx, c), then ones.
        pieces = []
        for dy in range(K):
            for dx in range(K):
                off = (dy - pad) * W + (dx - pad)      # flat spatial source offset
                if off == 0:
                    shifted = a
                else:
                    # want shifted[:, q] = a[:, (q + off) % total]  == jnp.roll(a, -off)
                    shifted = pltpu.roll(a, (-off) % total, axis=1)
                t = dy * K + dx
                if t == center:
                    pieces.append(shifted)             # centre tap is never masked
                else:
                    # mask zeroes taps outside the image (zero padding) and any
                    # tap that rolled across an image / array boundary.
                    pieces.append(shifted * masks[t:t + 1, :])
        pieces.append(ones_row)                        # bias row
        return jnp.concatenate(pieces, axis=0)         # (K*K*C + 1, total)

    x = x_ref[...]                                                    # (cin_pad, total)
    h1 = jnp.dot(w1_ref[...], im2col_aug(x),
                 preferred_element_type=jnp.float32)                  # (ch_pad, total)
    h2 = jnp.dot(w2_ref[...], im2col_aug(h1),
                 preferred_element_type=jnp.float32)                  # (Cout, total)
    g = gamma_ref[0, 0]
    y = h2 * jnp.where(h2 >= 0, g, 0.1 * g)            # LeakyReLU(h2) * gamma
    out_ref[...] = y.astype(out_ref.dtype)


def _tap_masks(H, W, K):
    """(K*K, H*W) 0/1 masks: validity of each conv tap at each output pixel."""
    pad = K // 2
    h = np.arange(H * W) // W
    w = np.arange(H * W) % W
    m = np.zeros((K * K, H * W), np.float32)
    for dy in range(K):
        for dx in range(K):
            dh, dw = dy - pad, dx - pad
            m[dy * K + dx] = ((h + dh >= 0) & (h + dh < H) &
                              (w + dw >= 0) & (w + dw < W)).astype(np.float32)
    return jnp.asarray(m)


def _tensorcores_per_device():
    """2 on megacore-style chips (v4/v5p/v7x), else 1.  Only used to keep the
    grid long enough that no TensorCore idles; a wrong guess stays correct."""
    try:
        kind = jax.devices()[0].device_kind.lower()
    except Exception:
        return 1
    return 2 if any(t in kind for t in ("v4", "v5p", "v7", "7x")) else 1


def _pick_batch_tile(n_batch, hw, n_cores):
    """Images per grid step: fold the batch onto the lane axis to amortize the
    ~0.35us per-step overhead, keep grid >= n_cores (v7x), cap lanes/step ~4096."""
    max_imgs = max(1, 4096 // hw)
    tile = max(1, min(n_batch, max_imgs, max(1, n_batch // n_cores)))
    while n_batch % tile:               # every block must hold only real images
        tile -= 1
    if (tile * hw) % 128 and tile != n_batch:
        tile = n_batch                  # lane block must be a multiple of 128 or full
    return tile


def prepare_fconv_params(w1_oihw, b1, w2_oihw, b2, gamma, H, W):
    """One-time layout work (parameter-init time, NOT per forward): flatten conv
    weights to the exact MXU layout with the bias folded in as an extra column,
    zero-pad channel dims to sublane multiples of 8, and build boundary masks."""
    Ch, Cin, K, _ = w1_oihw.shape
    Cout, Ch2, K2, _ = w2_oihw.shape
    assert Ch2 == Ch and K2 == K
    cin_p = _round_up(Cin, 8)           # sublane-align conv1 im2col pieces
    ch_p = _round_up(Ch, 8)             # sublane-align conv2 im2col pieces

    # conv1: OIHW -> (O_pad, K*K*I_pad) with row order (dy, dx, i); + bias column.
    w1 = jnp.pad(jnp.asarray(w1_oihw, jnp.float32),
                 ((0, ch_p - Ch), (0, cin_p - Cin), (0, 0), (0, 0)))
    w1_flat = jnp.transpose(w1, (0, 2, 3, 1)).reshape(ch_p, K * K * cin_p)
    b1_col = jnp.pad(jnp.asarray(b1, jnp.float32), (0, ch_p - Ch)).reshape(ch_p, 1)
    w1_aug = jnp.concatenate([w1_flat, b1_col], axis=1)         # (ch_p, K*K*cin_p+1)

    # conv2: contracts over the (possibly padded) hidden channels; + bias column.
    w2 = jnp.pad(jnp.asarray(w2_oihw, jnp.float32),
                 ((0, 0), (0, ch_p - Ch), (0, 0), (0, 0)))
    w2_flat = jnp.transpose(w2, (0, 2, 3, 1)).reshape(Cout, K * K * ch_p)
    b2_col = jnp.asarray(b2, jnp.float32).reshape(Cout, 1)
    w2_aug = jnp.concatenate([w2_flat, b2_col], axis=1)         # (Cout, K*K*ch_p+1)

    return dict(
        w1_aug=w1_aug, w2_aug=w2_aug,
        gamma=jnp.asarray(gamma, jnp.float32).reshape(1, 1),
        masks=_tap_masks(H, W, K),                               # (K*K, H*W)
        dims=dict(H=H, W=W, K=K, cin=Cin, cin_pad=cin_p, ch_pad=ch_p, cout=Cout),
    )


def f_conv_forward(x_nchw, params):
    """F_conv.forward: LeakyReLU_0.1(conv2(conv1(x))) * gamma.  NCHW in, NCHW out."""
    d = params["dims"]
    H, W, K = d["H"], d["W"], d["K"]
    Cin, cin_p, ch_p, Cout = d["cin"], d["cin_pad"], d["ch_pad"], d["cout"]
    N = x_nchw.shape[0]
    HW = H * W
    assert x_nchw.shape == (N, Cin, H, W)

    tile = _pick_batch_tile(N, HW, _tensorcores_per_device())
    lanes = tile * HW

    # Layout plumbing (tiny): pad Cin to a sublane multiple and go lane-major
    # (C, N*H*W) with image-major flat pixel index, so each image owns a
    # contiguous lane range and the roll+mask im2col works across the batch.
    x_pad = jnp.pad(x_nchw.astype(jnp.float32),
                    ((0, 0), (0, cin_p - Cin), (0, 0), (0, 0)))
    x_lanes = jnp.transpose(x_pad, (1, 0, 2, 3)).reshape(cin_p, N * HW)
    masks_tiled = jnp.tile(params["masks"], (1, tile))           # (K*K, lanes)

    kern = functools.partial(_fused_fconv_kernel, H=H, W=W, K=K, batch_tile=tile)
    out_lanes = pl.pallas_call(
        kern,
        out_shape=jax.ShapeDtypeStruct((Cout, N * HW), jnp.float32),
        grid=(N // tile,),
        in_specs=[
            pl.BlockSpec((cin_p, lanes), lambda n: (0, n)),           # x (tile images)
            pl.BlockSpec((K * K, lanes), lambda n: (0, 0)),           # boundary masks
            pl.BlockSpec((ch_p, K * K * cin_p + 1), lambda n: (0, 0)),  # [w1 | b1]
            pl.BlockSpec((Cout, K * K * ch_p + 1), lambda n: (0, 0)),   # [w2 | b2]
            pl.BlockSpec(memory_space=pltpu.MemorySpace.SMEM),        # gamma scalar
        ],
        out_specs=pl.BlockSpec((Cout, lanes), lambda n: (0, n)),
        compiler_params=pltpu.CompilerParams(
            dimension_semantics=("parallel",),      # v4/v5p/v7x: shard steps over TCs
            vmem_limit_bytes=8 * 1024 * 1024),      # footprint is far below this
    )(x_lanes, masks_tiled, params["w1_aug"], params["w2_aug"], params["gamma"])

    # (Cout, N*H*W) -> NCHW: free reshapes + one tiny transpose.
    return jnp.transpose(out_lanes.reshape(Cout, N, H, W), (1, 0, 2, 3))


def _reference_forward(x, w1, b1, w2, b2, gamma, pad):
    dn = ('NCHW', 'OIHW', 'NCHW')
    y1 = jax.lax.conv_general_dilated(x, w1, (1, 1), [(pad, pad), (pad, pad)],
                                      dimension_numbers=dn) + b1[None, :, None, None]
    y2 = jax.lax.conv_general_dilated(y1, w2, (1, 1), [(pad, pad), (pad, pad)],
                                      dimension_numbers=dn) + b2[None, :, None, None]
    return jnp.where(y2 >= 0, y2, 0.1 * y2) * gamma


if __name__ == "__main__":
    # Module config: F_conv(in_channel=4, channel=4, channels_hidden=8, kernel_size=3)
    in_channel, channel, channels_hidden, kernel_size = 4, 4, 8, 3
    N, H, W = 2, 16, 16
    pad = kernel_size // 2

    key = jax.random.PRNGKey(0)
    kx, k1, kb1, k2, kb2 = jax.random.split(key, 5)

    x = jax.random.normal(kx, (N, in_channel, H, W), jnp.float32)
    # conv1: (channels_hidden, in_channel, K, K), conv2: (channel, channels_hidden, K, K)
    w1 = 0.1 * jax.random.normal(k1, (channels_hidden, in_channel, kernel_size, kernel_size), jnp.float32)
    b1 = 0.1 * jax.random.normal(kb1, (channels_hidden,), jnp.float32)
    w2 = 0.1 * jax.random.normal(k2, (channel, channels_hidden, kernel_size, kernel_size), jnp.float32)
    b2 = 0.1 * jax.random.normal(kb2, (channel,), jnp.float32)
    gamma = jnp.ones((), jnp.float32)        # nn.Parameter(torch.ones(1))

    params = prepare_fconv_params(w1, b1, w2, b2, gamma, H, W)   # one-time layout prep
    fwd = jax.jit(lambda xx: f_conv_forward(xx, params))

    out = jax.block_until_ready(fwd(x))

    ref = _reference_forward(x, w1, b1, w2, b2, gamma, pad)
    assert out.shape == (N, channel, H, W), out.shape
    assert jnp.allclose(out, ref, atol=1e-4, rtol=1e-4), float(jnp.max(jnp.abs(out - ref)))

    print("KERNEL_OK")
</pallas_src>

<mosaic_0001>
module attributes {stable_mosaic.version = 11 : i64} {
  func.func @_fused_fconv_kernel(%arg0: i32, %arg1: memref<8x512xf32, #tpu.memory_space<vmem>>, %arg2: memref<9x512xf32, #tpu.memory_space<vmem>>, %arg3: memref<8x73xf32, #tpu.memory_space<vmem>>, %arg4: memref<4x73xf32, #tpu.memory_space<vmem>>, %arg5: memref<1x1xf32, #tpu.memory_space<smem>>, %arg6: memref<4x512xf32, #tpu.memory_space<vmem>>) attributes {dimension_semantics = [#tpu.dimension_semantics<parallel>], iteration_bounds = array<i64: 1>, scalar_prefetch = 0 : i64, scratch_operands = 0 : i64, tpu.core_type = #tpu.core_type<tc>, window_params = [{transform_indices = @transform_0, window_bounds = array<i64: 8, 512>}, {pipeline_mode = #tpu.pipeline_mode<synchronous>, transform_indices = @transform_1, window_bounds = array<i64: 9, 512>}, {pipeline_mode = #tpu.pipeline_mode<synchronous>, transform_indices = @transform_2, window_bounds = array<i64: 8, 73>}, {pipeline_mode = #tpu.pipeline_mode<synchronous>, transform_indices = @transform_3, window_bounds = array<i64: 4, 73>}, {transform_indices = @transform_4, window_bounds = array<i64: 1, 1>}, {transform_indices = @transform_5, window_bounds = array<i64: 4, 512>}]} {
    %c0 = arith.constant 0 : index
    %c0_0 = arith.constant 0 : index
    %0 = vector.load %arg2[%c0, %c0_0] : memref<9x512xf32, #tpu.memory_space<vmem>>, vector<9x512xf32>
    %1 = vector.extract_strided_slice %0 {offsets = [4, 0], sizes = [1, 512], strides = [1, 1]} : vector<9x512xf32> to vector<1x512xf32>
    %c0_1 = arith.constant 0 : index
    %c0_2 = arith.constant 0 : index
    %2 = vector.load %arg1[%c0_1, %c0_2] : memref<8x512xf32, #tpu.memory_space<vmem>>, vector<8x512xf32>
    %c0_3 = arith.constant 0 : index
    %c0_4 = arith.constant 0 : index
    %3 = vector.load %arg3[%c0_3, %c0_4] : memref<8x73xf32, #tpu.memory_space<vmem>>, vector<8x73xf32>
    %c17_i32 = arith.constant 17 : i32
    %4 = tpu.dynamic_rotate %2 by %c17_i32 dim 1 : vector<8x512xf32>, i32 -> vector<8x512xf32>
    %5 = vector.extract_strided_slice %0 {offsets = [0, 0], sizes = [1, 512], strides = [1, 1]} : vector<9x512xf32> to vector<1x512xf32>
    %6 = vector.broadcast %5 : vector<1x512xf32> to vector<8x512xf32>
    %7 = arith.mulf %4, %6 : vector<8x512xf32>
    %c16_i32 = arith.constant 16 : i32
    %8 = tpu.dynamic_rotate %2 by %c16_i32 dim 1 : vector<8x512xf32>, i32 -> vector<8x512xf32>
    %9 = vector.extract_strided_slice %0 {offsets = [1, 0], sizes = [1, 512], strides = [1, 1]} : vector<9x512xf32> to vector<1x512xf32>
    %10 = vector.broadcast %9 : vector<1x512xf32> to vector<8x512xf32>
    %11 = arith.mulf %8, %10 : vector<8x512xf32>
    %c15_i32 = arith.constant 15 : i32
    %12 = tpu.dynamic_rotate %2 by %c15_i32 dim 1 : vector<8x512xf32>, i32 -> vector<8x512xf32>
    %13 = vector.extract_strided_slice %0 {offsets = [2, 0], sizes = [1, 512], strides = [1, 1]} : vector<9x512xf32> to vector<1x512xf32>
    %14 = vector.broadcast %13 : vector<1x512xf32> to vector<8x512xf32>
    %15 = arith.mulf %12, %14 : vector<8x512xf32>
    %c1_i32 = arith.constant 1 : i32
    %16 = tpu.dynamic_rotate %2 by %c1_i32 dim 1 : vector<8x512xf32>, i32 -> vector<8x512xf32>
    %17 = vector.extract_strided_slice %0 {offsets = [3, 0], sizes = [1, 512], strides = [1, 1]} : vector<9x512xf32> to vector<1x512xf32>
    %18 = vector.broadcast %17 : vector<1x512xf32> to vector<8x512xf32>
    %19 = arith.mulf %16, %18 : vector<8x512xf32>
    %c511_i32 = arith.constant 511 : i32
    %20 = tpu.dynamic_rotate %2 by %c511_i32 dim 1 : vector<8x512xf32>, i32 -> vector<8x512xf32>
    %21 = vector.extract_strided_slice %0 {offsets = [5, 0], sizes = [1, 512], strides = [1, 1]} : vector<9x512xf32> to vector<1x512xf32>
    %22 = vector.broadcast %21 : vector<1x512xf32> to vector<8x512xf32>
    %23 = arith.mulf %20, %22 : vector<8x512xf32>
    %c497_i32 = arith.constant 497 : i32
    %24 = tpu.dynamic_rotate %2 by %c497_i32 dim 1 : vector<8x512xf32>, i32 -> vector<8x512xf32>
    %25 = vector.extract_strided_slice %0 {offsets = [6, 0], sizes = [1, 512], strides = [1, 1]} : vector<9x512xf32> to vector<1x512xf32>
    %26 = vector.broadcast %25 : vector<1x512xf32> to vector<8x512xf32>
    %27 = arith.mulf %24, %26 : vector<8x512xf32>
    %c496_i32 = arith.constant 496 : i32
    %28 = tpu.dynamic_rotate %2 by %c496_i32 dim 1 : vector<8x512xf32>, i32 -> vector<8x512xf32>
    %29 = vector.extract_strided_slice %0 {offsets = [7, 0], sizes = [1, 512], strides = [1, 1]} : vector<9x512xf32> to vector<1x512xf32>
    %30 = vector.broadcast %29 : vector<1x512xf32> to vector<8x512xf32>
    %31 = arith.mulf %28, %30 : vector<8x512xf32>
    %c495_i32 = arith.constant 495 : i32
    %32 = tpu.dynamic_rotate %2 by %c495_i32 dim 1 : vector<8x512xf32>, i32 -> vector<8x512xf32>
    %33 = vector.extract_strided_slice %0 {offsets = [8, 0], sizes = [1, 512], strides = [1, 1]} : vector<9x512xf32> to vector<1x512xf32>
    %34 = vector.broadcast %33 : vector<1x512xf32> to vector<8x512xf32>
    %35 = arith.mulf %32, %34 : vector<8x512xf32>
    %36 = tpu.concatenate %7, %11, %15, %19, %2, %23, %27, %31, %35, %1 in 0 : vector<8x512xf32>, vector<8x512xf32>, vector<8x512xf32>, vector<8x512xf32>, vector<8x512xf32>, vector<8x512xf32>, vector<8x512xf32>, vector<8x512xf32>, vector<8x512xf32>, vector<1x512xf32> -> vector<73x512xf32>
    %cst = arith.constant dense<0.000000e+00> : vector<8x512xf32>
    %37 = tpu.matmul %3, %36, %cst {dimension_numbers = #tpu.dot_dimension_numbers<[1], [0], [0], [1], [0, 0, 1, 1], [], []>} : vector<8x73xf32>, vector<73x512xf32>, vector<8x512xf32> -> vector<8x512xf32>
    %c0_5 = arith.constant 0 : index
    %c0_6 = arith.constant 0 : index
    %38 = vector.load %arg4[%c0_5, %c0_6] : memref<4x73xf32, #tpu.memory_space<vmem>>, vector<4x73xf32>
    %c17_i32_7 = arith.constant 17 : i32
    %39 = tpu.dynamic_rotate %37 by %c17_i32_7 dim 1 : vector<8x512xf32>, i32 -> vector<8x512xf32>
    %40 = vector.extract_strided_slice %0 {offsets = [0, 0], sizes = [1, 512], strides = [1, 1]} : vector<9x512xf32> to vector<1x512xf32>
    %41 = vector.broadcast %40 : vector<1x512xf32> to vector<8x512xf32>
    %42 = arith.mulf %39, %41 : vector<8x512xf32>
    %c16_i32_8 = arith.constant 16 : i32
    %43 = tpu.dynamic_rotate %37 by %c16_i32_8 dim 1 : vector<8x512xf32>, i32 -> vector<8x512xf32>
    %44 = vector.extract_strided_slice %0 {offsets = [1, 0], sizes = [1, 512], strides = [1, 1]} : vector<9x512xf32> to vector<1x512xf32>
    %45 = vector.broadcast %44 : vector<1x512xf32> to vector<8x512xf32>
    %46 = arith.mulf %43, %45 : vector<8x512xf32>
    %c15_i32_9 = arith.constant 15 : i32
    %47 = tpu.dynamic_rotate %37 by %c15_i32_9 dim 1 : vector<8x512xf32>, i32 -> vector<8x512xf32>
    %48 = vector.extract_strided_slice %0 {offsets = [2, 0], sizes = [1, 512], strides = [1, 1]} : vector<9x512xf32> to vector<1x512xf32>
    %49 = vector.broadcast %48 : vector<1x512xf32> to vector<8x512xf32>
    %50 = arith.mulf %47, %49 : vector<8x512xf32>
    %c1_i32_10 = arith.constant 1 : i32
    %51 = tpu.dynamic_rotate %37 by %c1_i32_10 dim 1 : vector<8x512xf32>, i32 -> vector<8x512xf32>
    %52 = vector.extract_strided_slice %0 {offsets = [3, 0], sizes = [1, 512], strides = [1, 1]} : vector<9x512xf32> to vector<1x512xf32>
    %53 = vector.broadcast %52 : vector<1x512xf32> to vector<8x512xf32>
    %54 = arith.mulf %51, %53 : vector<8x512xf32>
    %c511_i32_11 = arith.constant 511 : i32
    %55 = tpu.dynamic_rotate %37 by %c511_i32_11 dim 1 : vector<8x512xf32>, i32 -> vector<8x512xf32>
    %56 = vector.extract_strided_slice %0 {offsets = [5, 0], sizes = [1, 512], strides = [1, 1]} : vector<9x512xf32> to vector<1x512xf32>
    %57 = vector.broadcast %56 : vector<1x512xf32> to vector<8x512xf32>
    %58 = arith.mulf %55, %57 : vector<8x512xf32>
    %c497_i32_12 = arith.constant 497 : i32
    %59 = tpu.dynamic_rotate %37 by %c497_i32_12 dim 1 : vector<8x512xf32>, i32 -> vector<8x512xf32>
    %60 = vector.extract_strided_slice %0 {offsets = [6, 0], sizes = [1, 512], strides = [1, 1]} : vector<9x512xf32> to vector<1x512xf32>
    %61 = vector.broadcast %60 : vector<1x512xf32> to vector<8x512xf32>
    %62 = arith.mulf %59, %61 : vector<8x512xf32>
    %c496_i32_13 = arith.constant 496 : i32
    %63 = tpu.dynamic_rotate %37 by %c496_i32_13 dim 1 : vector<8x512xf32>, i32 -> vector<8x512xf32>
    %64 = vector.extract_strided_slice %0 {offsets = [7, 0], sizes = [1, 512], strides = [1, 1]} : vector<9x512xf32> to vector<1x512xf32>
    %65 = vector.broadcast %64 : vector<1x512xf32> to vector<8x512xf32>
    %66 = arith.mulf %63, %65 : vector<8x512xf32>
    %c495_i32_14 = arith.constant 495 : i32
    %67 = tpu.dynamic_rotate %37 by %c495_i32_14 dim 1 : vector<8x512xf32>, i32 -> vector<8x512xf32>
    %68 = vector.extract_strided_slice %0 {offsets = [8, 0], sizes = [1, 512], strides = [1, 1]} : vector<9x512xf32> to vector<1x512xf32>
    %69 = vector.broadcast %68 : vector<1x512xf32> to vector<8x512xf32>
    %70 = arith.mulf %67, %69 : vector<8x512xf32>
    %71 = tpu.concatenate %42, %46, %50, %54, %37, %58, %62, %66, %70, %1 in 0 : vector<8x512xf32>, vector<8x512xf32>, vector<8x512xf32>, vector<8x512xf32>, vector<8x512xf32>, vector<8x512xf32>, vector<8x512xf32>, vector<8x512xf32>, vector<8x512xf32>, vector<1x512xf32> -> vector<73x512xf32>
    %cst_15 = arith.constant dense<0.000000e+00> : vector<4x512xf32>
    %72 = tpu.matmul %38, %71, %cst_15 {dimension_numbers = #tpu.dot_dimension_numbers<[1], [0], [0], [1], [0, 0, 1, 1], [], []>} : vector<4x73xf32>, vector<73x512xf32>, vector<4x512xf32> -> vector<4x512xf32>
    %c0_16 = arith.constant 0 : index
    %c0_17 = arith.constant 0 : index
    %73 = memref.load %arg5[%c0_16, %c0_17] : memref<1x1xf32, #tpu.memory_space<smem>>
    %cst_18 = arith.constant 0.000000e+00 : f32
    %74 = vector.broadcast %cst_18 : f32 to vector<4x512xf32>
    %75 = arith.cmpf oge, %72, %74 : vector<4x512xf32>
    %cst_19 = arith.constant 1.000000e-01 : f32
    %76 = arith.mulf %cst_19, %73 : f32
    %77 = vector.broadcast %73 : f32 to vector<4x512xf32>
    %78 = vector.broadcast %76 : f32 to vector<4x512xf32>
    %79 = arith.select %75, %77, %78 : vector<4x512xi1>, vector<4x512xf32>
    %80 = arith.mulf %72, %79 : vector<4x512xf32>
    %c0_20 = arith.constant 0 : index
    %c0_21 = arith.constant 0 : index
    %81 = vector.load %arg6[%c0_20, %c0_21] : memref<4x512xf32, #tpu.memory_space<vmem>>, vector<4x512xf32>
    tpu.vector_store %arg6[%c0_20, %c0_21], %80 {strides = array<i32>} : memref<4x512xf32, #tpu.memory_space<vmem>>, vector<4x512xf32>,
    return
  }
  func.func @transform_0(%arg0: i32) -> (i32, i32) {
    %c0_i32 = arith.constant 0 : i32
    %c0_i32_0 = arith.constant 0 : i32
    return %c0_i32, %arg0 : i32, i32
  }
  func.func @transform_1(%arg0: i32) -> (i32, i32) {
    %c0_i32 = arith.constant 0 : i32
    %c0_i32_0 = arith.constant 0 : i32
    %c0_i32_1 = arith.constant 0 : i32
    return %c0_i32, %c0_i32_0 : i32, i32
  }
  func.func @transform_2(%arg0: i32) -> (i32, i32) {
    %c0_i32 = arith.constant 0 : i32
    %c0_i32_0 = arith.constant 0 : i32
    %c0_i32_1 = arith.constant 0 : i32
    return %c0_i32, %c0_i32_0 : i32, i32
  }
  func.func @transform_3(%arg0: i32) -> (i32, i32) {
    %c0_i32 = arith.constant 0 : i32
    %c0_i32_0 = arith.constant 0 : i32
    %c0_i32_1 = arith.constant 0 : i32
    return %c0_i32, %c0_i32_0 : i32, i32
  }
  func.func @transform_4(%arg0: i32) -> (i32, i32) {
    %c0_i32 = arith.constant 0 : i32
    %c0_i32_0 = arith.constant 0 : i32
    %c0_i32_1 = arith.constant 0 : i32
    return %c0_i32, %c0_i32_0 : i32, i32
  }
  func.func @transform_5(%arg0: i32) -> (i32, i32) {
    %c0_i32 = arith.constant 0 : i32
    %c0_i32_0 = arith.constant 0 : i32
    return %c0_i32, %arg0 : i32, i32
  }
}

</mosaic_0001>

<llo_original>
// kernel: _lambda_.1
$region0: #{_lambda_.1}
  #allocation0 [shape = 'u32[]', space=smem, size = 0x4, offset = 0x4, fixed_abs, tag = 'smem constant byte address 0x4 - core index']
  #allocation1 [shape = 'u32[72,128]{1,0:T(1,128)}', space=vmem, size = 0x9000, scoped, tag = 'internal scratch']
  #allocation2 [shape = 'f32[1,1]{1,0:T(1,128)S(6)}', space=smem, size = 0x200, scoped, tag = 'scoped memory for _lambda_.1']
  %s0 = inlined_call_operand.vmem [shape: f32[8,512], index: 0, kind: input, shape index: {}]
  %s1 = inlined_call_operand.vmem [shape: f32[9,512], index: 1, kind: input, shape index: {}]
  %s2 = inlined_call_operand.vmem [shape: f32[8,73], index: 2, kind: input, shape index: {}]
  %s3 = inlined_call_operand.vmem [shape: f32[4,73], index: 3, kind: input, shape index: {}]
  %s4 = inlined_call_operand.<no memory space> [shape: f32[1,1], index: 4, kind: input, shape index: {}]
  %s5 = inlined_call_operand.vmem [shape: f32[4,512], index: 5, kind: output, shape index: {}]
  %s6 = sld [smem:[#allocation0]]
  $region30: #{_lambda_.1} parent=0
    _
  %s8 = ssub.s32 1, %s6
  %s9 = scalar_select 0, %s8, %s6
  %10 = sst [smem:[#allocation2]] %s4
  // Predicated region
  $region2: #{_lambda_.1} parent=0 // pred_check
    _
  $region3: #{_lambda_.1} parent=0 // pred_check_branch
    %12 = sbr.rel (0) target = $region5
  $region4: #{_lambda_.1} parent=0 // pred_region
    _
  $region5: #{_lambda_.1} parent=0 // pred_fallthru
    _
  // Predicated region
  $region6: #{_lambda_.1} parent=0 // pred_check
    _
  $region7: #{_lambda_.1} parent=0 // pred_check_branch
    %14 = sbr.rel (0) target = $region9
  $region8: #{_lambda_.1} parent=0 // pred_region
    _
  $region9: #{_lambda_.1} parent=0 // pred_fallthru
    _
  // Predicated region
  $region10: #{_lambda_.1} parent=0 // pred_check
    _
  $region11: #{_lambda_.1} parent=0 // pred_check_branch
    %16 = sbr.rel (0) target = $region13
  $region12: #{_lambda_.1} parent=0 // pred_region
    _
  $region13: #{_lambda_.1} parent=0 // pred_fallthru
    _
  // Predicated region
  $region14: #{_lambda_.1} parent=0 // pred_check
    _
  $region15: #{_lambda_.1} parent=0 // pred_check_branch
    %18 = sbr.rel (0) target = $region17
  $region16: #{_lambda_.1} parent=0 // pred_region
    _
  $region17: #{_lambda_.1} parent=0 // pred_fallthru
    _
  // Predicated region
  $region18: #{_lambda_.1} parent=0 // pred_check
    _
  $region19: #{_lambda_.1} parent=0 // pred_check_branch
    %20 = sbr.rel (0) target = $region21
  $region20: #{_lambda_.1} parent=0 // pred_region
    _
  $region21: #{_lambda_.1} parent=0 // pred_fallthru
    _
  %v21 = vld [vmem:[%s1] sm:$0xff]
  %v22 = vld [vmem:[%s1 + $0x8] sm:$0xff]
  %v23 = vld [vmem:[%s1 + $0x10] sm:$0xff]
  %v24 = vld [vmem:[%s1 + $0x18] sm:$0xff]
  %v25 = vld [vmem:[%s1 + $0x20] sm:$0x1]
  %v26 = vld [vmem:[%s1 + $0x28] sm:$0x1]
  %v27 = vld [vmem:[%s1 + $0x30] sm:$0x1]
  %v28 = vld [vmem:[%s1 + $0x38] sm:$0x1]
  %v29 = vld [vmem:[%s0] sm:$0xff]
  %v30 = vld [vmem:[%s0 + $0x8] sm:$0xff]
  %v31 = vld [vmem:[%s0 + $0x10] sm:$0xff]
  %v32 = vld [vmem:[%s0 + $0x18] sm:$0xff]
  %v33 = vld [vmem:[%s2] sm:$0xff]
  %34 = vrot.lane.b32.xlu0 %v29, 17
  %v35 = vpop.permute.xlu0 %34
  %36 = vrot.lane.b32.xlu0 %v30, 17
  %v37 = vpop.permute.xlu0 %36
  %38 = vrot.lane.b32.xlu0 %v31, 17
  %v39 = vpop.permute.xlu0 %38
  %40 = vrot.lane.b32.xlu0 %v32, 17
  %v41 = vpop.permute.xlu0 %40
  %v42 = vlaneseq
  %v43 = vand.u32 %v42, 127
  %vm44 = vcmp.lt.s32.totalorder %v43, 17
  %v45 = vsel %vm44, %v39, %v41
  %v46 = vsel %vm44, %v37, %v39
  %v47 = vsel %vm44, %v35, %v37
  %v48 = vsel %vm44, %v41, %v35
  %v49 = vperm.slane %v21, 0
  %v50 = vperm.slane %v22, 0
  %v51 = vperm.slane %v23, 0
  %v52 = vperm.slane %v24, 0
  %v53 = vmul.f32 %v48, %v49
  %v54 = vmul.f32 %v47, %v50
  %v55 = vmul.f32 %v46, %v51
  %v56 = vmul.f32 %v45, %v52
  %57 = vrot.lane.b32.xlu0 %v29, 16
  %v58 = vpop.permute.xlu0 %57
  %59 = vrot.lane.b32.xlu0 %v30, 16
  %v60 = vpop.permute.xlu0 %59
  %61 = vrot.lane.b32.xlu0 %v31, 16
  %v62 = vpop.permute.xlu0 %61
  %63 = vrot.lane.b32.xlu0 %v32, 16
  %v64 = vpop.permute.xlu0 %63
  %vm65 = vcmp.lt.s32.totalorder %v43, 16
  %v66 = vsel %vm65, %v62, %v64
  %v67 = vsel %vm65, %v60, %v62
  %v68 = vsel %vm65, %v58, %v60
  %v69 = vsel %vm65, %v64, %v58
  %v70 = vperm.slane %v21, 1
  %v71 = vperm.slane %v22, 1
  %v72 = vperm.slane %v23, 1
  %v73 = vperm.slane %v24, 1
  %v74 = vmul.f32 %v69, %v70
  %v75 = vmul.f32 %v68, %v71
  %v76 = vmul.f32 %v67, %v72
  %v77 = vmul.f32 %v66, %v73
  %78 = vrot.lane.b32.xlu0 %v29, 15
  %v79 = vpop.permute.xlu0 %78
  %80 = vrot.lane.b32.xlu0 %v30, 15
  %v81 = vpop.permute.xlu0 %80
  %82 = vrot.lane.b32.xlu0 %v31, 15
  %v83 = vpop.permute.xlu0 %82
  %84 = vrot.lane.b32.xlu0 %v32, 15
  %v85 = vpop.permute.xlu0 %84
  %vm86 = vcmp.lt.s32.totalorder %v43, 15
  %v87 = vsel %vm86, %v83, %v85
  %v88 = vsel %vm86, %v81, %v83
  %v89 = vsel %vm86, %v79, %v81
  %v90 = vsel %vm86, %v85, %v79
  %v91 = vperm.slane %v21, 2
  %v92 = vperm.slane %v22, 2
  %v93 = vperm.slane %v23, 2
  %v94 = vperm.slane %v24, 2
  %v95 = vmul.f32 %v90, %v91
  %v96 = vmul.f32 %v89, %v92
  %v97 = vmul.f32 %v88, %v93
  %v98 = vmul.f32 %v87, %v94
  %99 = vrot.lane.b32.xlu0 %v29, 1
  %v100 = vpop.permute.xlu0 %99
  %101 = vrot.lane.b32.xlu0 %v30, 1
  %v102 = vpop.permute.xlu0 %101
  %103 = vrot.lane.b32.xlu0 %v31, 1
  %v104 = vpop.permute.xlu0 %103
  %105 = vrot.lane.b32.xlu0 %v32, 1
  %v106 = vpop.permute.xlu0 %105
  %vm107 = vcmp.lt.s32.totalorder %v43, 1
  %v108 = vsel %vm107, %v104, %v106
  %v109 = vsel %vm107, %v102, %v104
  %v110 = vsel %vm107, %v100, %v102
  %v111 = vsel %vm107, %v106, %v100
  %v112 = vperm.slane %v21, 3
  %v113 = vperm.slane %v22, 3
  %v114 = vperm.slane %v23, 3
  %v115 = vperm.slane %v24, 3
  %v116 = vmul.f32 %v111, %v112
  %v117 = vmul.f32 %v110, %v113
  %v118 = vmul.f32 %v109, %v114
  %v119 = vmul.f32 %v108, %v115
  %120 = vrot.lane.b32.xlu0 %v29, 127
  %v121 = vpop.permute.xlu0 %120
  %122 = vrot.lane.b32.xlu0 %v30, 127
  %v123 = vpop.permute.xlu0 %122
  %124 = vrot.lane.b32.xlu0 %v31, 127
  %v125 = vpop.permute.xlu0 %124
  %126 = vrot.lane.b32.xlu0 %v32, 127
  %v127 = vpop.permute.xlu0 %126
  %vm128 = vcmp.lt.s32.totalorder %v43, 127
  %v129 = vsel %vm128, %v125, %v127
  %v130 = vsel %vm128, %v123, %v125
  %v131 = vsel %vm128, %v121, %v123
  %v132 = vsel %vm128, %v127, %v121
  %v133 = vperm.slane %v21, 5
  %v134 = vperm.slane %v22, 5
  %v135 = vperm.slane %v23, 5
  %v136 = vperm.slane %v24, 5
  %v137 = vmul.f32 %v131, %v133
  %v138 = vmul.f32 %v130, %v134
  %v139 = vmul.f32 %v129, %v135
  %v140 = vmul.f32 %v132, %v136
  %141 = vrot.lane.b32.xlu0 %v29, 113
  %v142 = vpop.permute.xlu0 %141
  %143 = vrot.lane.b32.xlu0 %v30, 113
  %v144 = vpop.permute.xlu0 %143
  %145 = vrot.lane.b32.xlu0 %v31, 113
  %v146 = vpop.permute.xlu0 %145
  %147 = vrot.lane.b32.xlu0 %v32, 113
  %v148 = vpop.permute.xlu0 %147
  %vm149 = vcmp.lt.s32.totalorder %v43, 113
  %v150 = vsel %vm149, %v146, %v148
  %v151 = vsel %vm149, %v144, %v146
  %v152 = vsel %vm149, %v142, %v144
  %v153 = vsel %vm149, %v148, %v142
  %v154 = vperm.slane %v21, 6
  %v155 = vperm.slane %v22, 6
  %v156 = vperm.slane %v23, 6
  %v157 = vperm.slane %v24, 6
  %v158 = vmul.f32 %v152, %v154
  %v159 = vmul.f32 %v151, %v155
  %v160 = vmul.f32 %v150, %v156
  %v161 = vmul.f32 %v153, %v157
  %162 = vrot.lane.b32.xlu0 %v29, 112
  %v163 = vpop.permute.xlu0 %162
  %164 = vrot.lane.b32.xlu0 %v30, 112
  %v165 = vpop.permute.xlu0 %164
  %166 = vrot.lane.b32.xlu0 %v31, 112
  %v167 = vpop.permute.xlu0 %166
  %168 = vrot.lane.b32.xlu0 %v32, 112
  %v169 = vpop.permute.xlu0 %168
  %vm170 = vcmp.lt.s32.totalorder %v43, 112
  %v171 = vsel %vm170, %v167, %v169
  %v172 = vsel %vm170, %v165, %v167
  %v173 = vsel %vm170, %v163, %v165
  %v174 = vsel %vm170, %v169, %v163
  %v175 = vperm.slane %v21, 7
  %v176 = vperm.slane %v22, 7
  %v177 = vperm.slane %v23, 7
  %v178 = vperm.slane %v24, 7
  %v179 = vmul.f32 %v173, %v175
  %v180 = vmul.f32 %v172, %v176
  %v181 = vmul.f32 %v171, %v177
  %v182 = vmul.f32 %v174, %v178
  %183 = vrot.lane.b32.xlu0 %v29, 111
  %v184 = vpop.permute.xlu0 %183
  %185 = vrot.lane.b32.xlu0 %v30, 111
  %v186 = vpop.permute.xlu0 %185
  %187 = vrot.lane.b32.xlu0 %v31, 111
  %v188 = vpop.permute.xlu0 %187
  %189 = vrot.lane.b32.xlu0 %v32, 111
  %v190 = vpop.permute.xlu0 %189
  %vm191 = vcmp.lt.s32.totalorder %v43, 111
  %v192 = vsel %vm191, %v188, %v190
  %v193 = vsel %vm191, %v186, %v188
  %v194 = vsel %vm191, %v184, %v186
  %v195 = vsel %vm191, %v190, %v184
  %v196 = vperm.slane %v25, 0
  %v197 = vperm.slane %v26, 0
  %v198 = vperm.slane %v27, 0
  %v199 = vperm.slane %v28, 0
  %v200 = vmul.f32 %v194, %v196
  %v201 = vmul.f32 %v193, %v197
  %v202 = vmul.f32 %v192, %v198
  %v203 = vmul.f32 %v195, %v199
  %v208 = vrot.slane %v21, 4
  %v209 = vrot.slane %v22, 4
  %v210 = vrot.slane %v23, 4
  %v211 = vrot.slane %v24, 4
  %vm212 = vcmask 596992
  %v214 = vsel %vm212, %v33, 0
  %vm216 = vcmask 1040384
  %v217 = vsel %vm216, %v208, 0
  %v219 = vsel %vm216, %v209, 0
  %v221 = vsel %vm216, %v210, 0
  %v223 = vsel %vm216, %v211, 0
  %225 = vmatpush.msra.mxu0 0.0
  %226 = vmatpush.msra.mxu0 0.0
  %227 = vmatpush.msra.mxu0 0.0
  %228 = vmatpush.msra.mxu0 0.0
  %229 = vmatpush.msra.mxu0 0.0
  %230 = vmatpush.msra.mxu0 0.0
  %231 = vmatpush.msra.mxu0 %v217
  %232 = vmatpush.msra.mxu0 %v200
  %233 = vmatpush.msra.mxu0 %v179
  %234 = vmatpush.msra.mxu0 %v158
  %235 = vmatpush.msra.mxu0 %v137
  %236 = vmatpush.msra.mxu0 %v29
  %237 = vmatpush.msra.mxu0 %v116
  %238 = vmatpush.msra.mxu0 %v95
  %239 = vmatpush.msra.mxu0 %v74
  %240 = vmatpush.msra.mxu0 %v53
  %241 = vmatmul.f32.gmra.mxu0 %v214
  %v242 = vpop.f32.mrf.mxu0
  %v243 = vadd.f32 0.0, %v242
  %244 = vdwg.mxu0
  %245 = vmatpush.msra.mxu0 0.0
  %246 = vmatpush.msra.mxu0 0.0
  %247 = vmatpush.msra.mxu0 0.0
  %248 = vmatpush.msra.mxu0 0.0
  %249 = vmatpush.msra.mxu0 0.0
  %250 = vmatpush.msra.mxu0 0.0
  %251 = vmatpush.msra.mxu0 %v219
  %252 = vmatpush.msra.mxu0 %v201
  %253 = vmatpush.msra.mxu0 %v180
  %254 = vmatpush.msra.mxu0 %v159
  %255 = vmatpush.msra.mxu0 %v138
  %256 = vmatpush.msra.mxu0 %v30
  %257 = vmatpush.msra.mxu0 %v117
  %258 = vmatpush.msra.mxu0 %v96
  %259 = vmatpush.msra.mxu0 %v75
  %260 = vmatpush.msra.mxu0 %v54
  %261 = vmatmul.f32.gmra.mxu0 %v214
  %v262 = vpop.f32.mrf.mxu0
  %v263 = vadd.f32 0.0, %v262
  %264 = vdwg.mxu0
  %265 = vmatpush.msra.mxu0 0.0
  %266 = vmatpush.msra.mxu0 0.0
  %267 = vmatpush.msra.mxu0 0.0
  %268 = vmatpush.msra.mxu0 0.0
  %269 = vmatpush.msra.mxu0 0.0
  %270 = vmatpush.msra.mxu0 0.0
  %271 = vmatpush.msra.mxu0 %v221
  %272 = vmatpush.msra.mxu0 %v202
  %273 = vmatpush.msra.mxu0 %v181
  %274 = vmatpush.msra.mxu0 %v160
  %275 = vmatpush.msra.mxu0 %v139
  %276 = vmatpush.msra.mxu0 %v31
  %277 = vmatpush.msra.mxu0 %v118
  %278 = vmatpush.msra.mxu0 %v97
  %279 = vmatpush.msra.mxu0 %v76
  %280 = vmatpush.msra.mxu0 %v55
  %281 = vmatmul.f32.gmra.mxu0 %v214
  %v282 = vpop.f32.mrf.mxu0
  %v283 = vadd.f32 0.0, %v282
  %284 = vdwg.mxu0
  %285 = vmatpush.msra.mxu0 0.0
  %286 = vmatpush.msra.mxu0 0.0
  %287 = vmatpush.msra.mxu0 0.0
  %288 = vmatpush.msra.mxu0 0.0
  %289 = vmatpush.msra.mxu0 0.0
  %290 = vmatpush.msra.mxu0 0.0
  %291 = vmatpush.msra.mxu0 %v223
  %292 = vmatpush.msra.mxu0 %v203
  %293 = vmatpush.msra.mxu0 %v182
  %294 = vmatpush.msra.mxu0 %v161
  %295 = vmatpush.msra.mxu0 %v140
  %296 = vmatpush.msra.mxu0 %v32
  %297 = vmatpush.msra.mxu0 %v119
  %298 = vmatpush.msra.mxu0 %v98
  %299 = vmatpush.msra.mxu0 %v77
  %300 = vmatpush.msra.mxu0 %v56
  %301 = vmatmul.f32.gmra.mxu0 %v214
  %v302 = vpop.f32.mrf.mxu0
  %v303 = vadd.f32 0.0, %v302
  %304 = vdwg.mxu0
  %v305 = vld [vmem:[%s3] sm:$0xf]
  %306 = vrot.lane.b32.xlu0 %v243, 17
  %v307 = vpop.permute.xlu0 %306
  %308 = vrot.lane.b32.xlu0 %v263, 17
  %v309 = vpop.permute.xlu0 %308
  %310 = vrot.lane.b32.xlu0 %v283, 17
  %v311 = vpop.permute.xlu0 %310
  %312 = vrot.lane.b32.xlu0 %v303, 17
  %v313 = vpop.permute.xlu0 %312
  %v314 = vsel %vm44, %v311, %v313
  %v315 = vsel %vm44, %v309, %v311
  %v316 = vsel %vm44, %v307, %v309
  %v317 = vsel %vm44, %v313, %v307
  %v318 = vmul.f32 %v317, %v49
  %v319 = vmul.f32 %v316, %v50
  %v320 = vmul.f32 %v315, %v51
  %v321 = vmul.f32 %v314, %v52
  %322 = vrot.lane.b32.xlu0 %v243, 16
  %v323 = vpop.permute.xlu0 %322
  %324 = vrot.lane.b32.xlu0 %v263, 16
  %v325 = vpop.permute.xlu0 %324
  %326 = vrot.lane.b32.xlu0 %v283, 16
  %v327 = vpop.permute.xlu0 %326
  %328 = vrot.lane.b32.xlu0 %v303, 16
  %v329 = vpop.permute.xlu0 %328
  %v330 = vsel %vm65, %v327, %v329
  %v331 = vsel %vm65, %v325, %v327
  %v332 = vsel %vm65, %v323, %v325
  %v333 = vsel %vm65, %v329, %v323
  %v334 = vmul.f32 %v333, %v70
  %v335 = vmul.f32 %v332, %v71
  %v336 = vmul.f32 %v331, %v72
  %v337 = vmul.f32 %v330, %v73
  %338 = vrot.lane.b32.xlu0 %v243, 15
  %v339 = vpop.permute.xlu0 %338
  %340 = vrot.lane.b32.xlu0 %v263, 15
  %v341 = vpop.permute.xlu0 %340
  %342 = vrot.lane.b32.xlu0 %v283, 15
  %v343 = vpop.permute.xlu0 %342
  %344 = vrot.lane.b32.xlu0 %v303, 15
  %v345 = vpop.permute.xlu0 %344
  %v346 = vsel %vm86, %v343, %v345
  %v347 = vsel %vm86, %v341, %v343
  %v348 = vsel %vm86, %v339, %v341
  %v349 = vsel %vm86, %v345, %v339
  %v350 = vmul.f32 %v349, %v91
  %v351 = vmul.f32 %v348, %v92
  %v352 = vmul.f32 %v347, %v93
  %v353 = vmul.f32 %v346, %v94
  %354 = vrot.lane.b32.xlu0 %v243, 1
  %v355 = vpop.permute.xlu0 %354
  %356 = vrot.lane.b32.xlu0 %v263, 1
  %v357 = vpop.permute.xlu0 %356
  %358 = vrot.lane.b32.xlu0 %v283, 1
  %v359 = vpop.permute.xlu0 %358
  %360 = vrot.lane.b32.xlu0 %v303, 1
  %v361 = vpop.permute.xlu0 %360
  %v362 = vsel %vm107, %v359, %v361
  %v363 = vsel %vm107, %v357, %v359
  %v364 = vsel %vm107, %v355, %v357
  %v365 = vsel %vm107, %v361, %v355
  %v366 = vmul.f32 %v365, %v112
  %v367 = vmul.f32 %v364, %v113
  %v368 = vmul.f32 %v363, %v114
  %v369 = vmul.f32 %v362, %v115
  %370 = vrot.lane.b32.xlu0 %v243, 127
  %v371 = vpop.permute.xlu0 %370
  %372 = vrot.lane.b32.xlu0 %v263, 127
  %v373 = vpop.permute.xlu0 %372
  %374 = vrot.lane.b32.xlu0 %v283, 127
  %v375 = vpop.permute.xlu0 %374
  %376 = vrot.lane.b32.xlu0 %v303, 127
  %v377 = vpop.permute.xlu0 %376
  %v378 = vsel %vm128, %v375, %v377
  %v379 = vsel %vm128, %v373, %v375
  %v380 = vsel %vm128, %v371, %v373
  %v381 = vsel %vm128, %v377, %v371
  %v382 = vmul.f32 %v380, %v133
  %v383 = vmul.f32 %v379, %v134
  %v384 = vmul.f32 %v378, %v135
  %v385 = vmul.f32 %v381, %v136
  %386 = vrot.lane.b32.xlu0 %v243, 113
  %v387 = vpop.permute.xlu0 %386
  %388 = vrot.lane.b32.xlu0 %v263, 113
  %v389 = vpop.permute.xlu0 %388
  %390 = vrot.lane.b32.xlu0 %v283, 113
  %v391 = vpop.permute.xlu0 %390
  %392 = vrot.lane.b32.xlu0 %v303, 113
  %v393 = vpop.permute.xlu0 %392
  %v394 = vsel %vm149, %v391, %v393
  %v395 = vsel %vm149, %v389, %v391
  %v396 = vsel %vm149, %v387, %v389
  %v397 = vsel %vm149, %v393, %v387
  %v398 = vmul.f32 %v396, %v154
  %v399 = vmul.f32 %v395, %v155
  %v400 = vmul.f32 %v394, %v156
  %v401 = vmul.f32 %v397, %v157
  %402 = vrot.lane.b32.xlu0 %v243, 112
  %v403 = vpop.permute.xlu0 %402
  %404 = vrot.lane.b32.xlu0 %v263, 112
  %v405 = vpop.permute.xlu0 %404
  %406 = vrot.lane.b32.xlu0 %v283, 112
  %v407 = vpop.permute.xlu0 %406
  %408 = vrot.lane.b32.xlu0 %v303, 112
  %v409 = vpop.permute.xlu0 %408
  %v410 = vsel %vm170, %v407, %v409
  %v411 = vsel %vm170, %v405, %v407
  %v412 = vsel %vm170, %v403, %v405
  %v413 = vsel %vm170, %v409, %v403
  %v414 = vmul.f32 %v412, %v175
  %v415 = vmul.f32 %v411, %v176
  %v416 = vmul.f32 %v410, %v177
  %v417 = vmul.f32 %v413, %v178
  %418 = vrot.lane.b32.xlu0 %v243, 111
  %v419 = vpop.permute.xlu0 %418
  %420 = vrot.lane.b32.xlu0 %v263, 111
  %v421 = vpop.permute.xlu0 %420
  %422 = vrot.lane.b32.xlu0 %v283, 111
  %v423 = vpop.permute.xlu0 %422
  %424 = vrot.lane.b32.xlu0 %v303, 111
  %v425 = vpop.permute.xlu0 %424
  %v426 = vsel %vm191, %v423, %v425
  %v427 = vsel %vm191, %v421, %v423
  %v428 = vsel %vm191, %v419, %v421
  %v429 = vsel %vm191, %v425, %v419
  %v430 = vmul.f32 %v428, %v196
  %v431 = vmul.f32 %v427, %v197
  %v432 = vmul.f32 %v426, %v198
  %v433 = vmul.f32 %v429, %v199
  %v435 = vsel %vm212, %v305, 0
  %437 = vmatpush.msra.mxu0 0.0
  %438 = vmatpush.msra.mxu0 0.0
  %439 = vmatpush.msra.mxu0 0.0
  %440 = vmatpush.msra.mxu0 0.0
  %441 = vmatpush.msra.mxu0 0.0
  %442 = vmatpush.msra.mxu0 0.0
  %443 = vmatpush.msra.mxu0 %v217
  %444 = vmatpush.msra.mxu0 %v430
  %445 = vmatpush.msra.mxu0 %v414
  %446 = vmatpush.msra.mxu0 %v398
  %447 = vmatpush.msra.mxu0 %v382
  %448 = vmatpush.msra.mxu0 %v243
  %449 = vmatpush.msra.mxu0 %v366
  %450 = vmatpush.msra.mxu0 %v350
  %451 = vmatpush.msra.mxu0 %v334
  %452 = vmatpush.msra.mxu0 %v318
  %453 = vmatmul.f32.gmra.mxu0 %v435
  %v454 = vpop.f32.mrf.mxu0
  %v455 = vadd.f32 0.0, %v454
  %456 = vdwg.mxu0
  %457 = vmatpush.msra.mxu0 0.0
  %458 = vmatpush.msra.mxu0 0.0
  %459 = vmatpush.msra.mxu0 0.0
  %460 = vmatpush.msra.mxu0 0.0
  %461 = vmatpush.msra.mxu0 0.0
  %462 = vmatpush.msra.mxu0 0.0
  %463 = vmatpush.msra.mxu0 %v219
  %464 = vmatpush.msra.mxu0 %v431
  %465 = vmatpush.msra.mxu0 %v415
  %466 = vmatpush.msra.mxu0 %v399
  %467 = vmatpush.msra.mxu0 %v383
  %468 = vmatpush.msra.mxu0 %v263
  %469 = vmatpush.msra.mxu0 %v367
  %470 = vmatpush.msra.mxu0 %v351
  %471 = vmatpush.msra.mxu0 %v335
  %472 = vmatpush.msra.mxu0 %v319
  %473 = vmatmul.f32.gmra.mxu0 %v435
  %v474 = vpop.f32.mrf.mxu0
  %v475 = vadd.f32 0.0, %v474
  %476 = vdwg.mxu0
  %477 = vmatpush.msra.mxu0 0.0
  %478 = vmatpush.msra.mxu0 0.0
  %479 = vmatpush.msra.mxu0 0.0
  %480 = vmatpush.msra.mxu0 0.0
  %481 = vmatpush.msra.mxu0 0.0
  %482 = vmatpush.msra.mxu0 0.0
  %483 = vmatpush.msra.mxu0 %v221
  %484 = vmatpush.msra.mxu0 %v432
  %485 = vmatpush.msra.mxu0 %v416
  %486 = vmatpush.msra.mxu0 %v400
  %487 = vmatpush.msra.mxu0 %v384
  %488 = vmatpush.msra.mxu0 %v283
  %489 = vmatpush.msra.mxu0 %v368
  %490 = vmatpush.msra.mxu0 %v352
  %491 = vmatpush.msra.mxu0 %v336
  %492 = vmatpush.msra.mxu0 %v320
  %493 = vmatmul.f32.gmra.mxu0 %v435
  %v494 = vpop.f32.mrf.mxu0
  %v495 = vadd.f32 0.0, %v494
  %496 = vdwg.mxu0
  %497 = vmatpush.msra.mxu0 0.0
  %498 = vmatpush.msra.mxu0 0.0
  %499 = vmatpush.msra.mxu0 0.0
  %500 = vmatpush.msra.mxu0 0.0
  %501 = vmatpush.msra.mxu0 0.0
  %502 = vmatpush.msra.mxu0 0.0
  %503 = vmatpush.msra.mxu0 %v223
  %504 = vmatpush.msra.mxu0 %v433
  %505 = vmatpush.msra.mxu0 %v417
  %506 = vmatpush.msra.mxu0 %v401
  %507 = vmatpush.msra.mxu0 %v385
  %508 = vmatpush.msra.mxu0 %v303
  %509 = vmatpush.msra.mxu0 %v369
  %510 = vmatpush.msra.mxu0 %v353
  %511 = vmatpush.msra.mxu0 %v337
  %512 = vmatpush.msra.mxu0 %v321
  %513 = vmatmul.f32.gmra.mxu0 %v435
  %v514 = vpop.f32.mrf.mxu0
  %v515 = vadd.f32 0.0, %v514
  %516 = vdwg.mxu0
  %s517 = sld [smem:[#allocation2]]
  %vm518 = vcmp.ge.f32.partialorder %v455, 0.0
  %vm519 = vcmp.ge.f32.partialorder %v475, 0.0
  %vm520 = vcmp.ge.f32.partialorder %v495, 0.0
  %vm521 = vcmp.ge.f32.partialorder %v515, 0.0
  %s522 = smul.f32 %s517, 0.1
  %v523 = vstv %s517
  %v524 = vstv %s522
  %v525 = vsel %vm518, %v523, %v524
  %v526 = vsel %vm519, %v523, %v524
  %v527 = vsel %vm520, %v523, %v524
  %v528 = vsel %vm521, %v523, %v524
  %v529 = vmul.f32 %v455, %v525
  %v530 = vmul.f32 %v475, %v526
  %v531 = vmul.f32 %v495, %v527
  %v532 = vmul.f32 %v515, %v528
  %v537 = vrot.slane %v530, 4
  %v538 = vrot.slane %v532, 4
  %vm539 = vcmask 1043456
  %v540 = vsel %vm539, %v529, %v537
  %v541 = vsel %vm539, %v531, %v538
  %544 = vst [vmem:[%s5] sm:$0xff] %v540
  %545 = vst [vmem:[%s5 + $0x8] sm:$0xff] %v541
  // Predicated region
  $region22: #{_lambda_.1} parent=0 // pred_check
    _
  $region23: #{_lambda_.1} parent=0 // pred_check_branch
    %547 = sbr.rel (0) target = $region25
  $region24: #{_lambda_.1} parent=0 // pred_region
    _
  $region25: #{_lambda_.1} parent=0 // pred_fallthru
    _
  // Predicated region
  $region26: #{_lambda_.1} parent=0 // pred_check
    _
  $region27: #{_lambda_.1} parent=0 // pred_check_branch
    %549 = sbr.rel (0) target = $region29
  $region28: #{_lambda_.1} parent=0 // pred_region
    _
  $region29: #{_lambda_.1} parent=0 // pred_fallthru
    _

</llo_original>
